<compile_context>
chip_gen: v6e
topology: v6e:2x2x1
jax: 0.10.0
libtpu: 0.0.40
codegen_flags: <defaults>
</compile_context>

<pallas_src>
import functools

import jax
import jax.numpy as jnp
from jax import lax
from jax.experimental import pallas as pl
from jax.experimental.pallas import tpu as pltpu


def _round_up(x, m):
    return ((x + m - 1) // m) * m


def _fused_slgae_kernel(xT_ref, wT_ref, w2_ref, src_ref, dst_ref,   # VMEM inputs
                        out_ref,                                    # VMEM output [1, E_pad]
                        zT_ref,                                     # VMEM scratch [H_pad, N_pad] f32
                        *, n_etiles, e_tile):
    k = pl.program_id(0)

    # ---- encoder: z^T += W^T[:, k-tile] @ X^T[k-tile, :]   (MXU, f32 accumulate) ----
    @pl.when(k == 0)
    def _():
        zT_ref[...] = jnp.zeros_like(zT_ref)

    zT_ref[...] += jnp.dot(wT_ref[...], xT_ref[...],
                           preferred_element_type=jnp.float32)

    # ---- decoder: runs once, after the K reduction is complete ----
    @pl.when(k == pl.num_programs(0) - 1)
    def _():
        n_pad = zT_ref.shape[1]

        def edge_tile_body(t, carry):
            off = pl.multiple_of(t * e_tile, e_tile)
            src_ids = src_ref[:, pl.ds(off, e_tile)]          # [1, e_tile] int32
            dst_ids = dst_ref[:, pl.ds(off, e_tile)]          # [1, e_tile] int32

            # Transposed one-hot gather matrices: oh[n, e] = (n == idx[e]).
            rows = lax.broadcasted_iota(jnp.int32, (n_pad, e_tile), 0)
            src_oh = (rows == src_ids).astype(jnp.float32)    # [n_pad, e_tile]
            dst_oh = (rows == dst_ids).astype(jnp.float32)

            zt = zT_ref[...]                                  # [h_pad, n_pad] f32
            # z[src]^T and z[dst]^T via MXU matmuls (exact: one-hot entries are 0/1).
            zi = jnp.dot(zt, src_oh, preferred_element_type=jnp.float32)   # [h_pad, e_tile]
            zj = jnp.dot(zt, dst_oh, preferred_element_type=jnp.float32)   # [h_pad, e_tile]

            # logits[1, e_tile] = w2_row[1, H] @ (zi * zj)[H, e_tile]: plain matmul, no transpose.
            logits = jnp.dot(w2_ref[...], zi * zj,
                             preferred_element_type=jnp.float32)
            out_ref[:, pl.ds(off, e_tile)] = jax.nn.sigmoid(logits).astype(out_ref.dtype)
            return carry

        lax.fori_loop(0, n_etiles, edge_tile_body, 0)


def slgae_innerproduct_forward(X, weight, weight_two,
                               train_edges, train_false_edges, *,
                               block_k=256, e_tile=256,
                               encoder_dtype=jnp.float32):
    """Fused SLGAE_Innerproduct forward. Returns sigmoid probabilities, shape [E, 1]."""
    n, kdim = X.shape
    hdim = weight.shape[1]

    edges = jnp.concatenate([train_edges, train_false_edges], axis=0).astype(jnp.int32)
    e = edges.shape[0]
    # VMEM refs have no bounds checks: clamp user-supplied indices to valid node rows.
    edges = jnp.clip(edges, 0, n - 1)

    # Lane/sublane friendly zero-padding (mathematically inert: padded K rows/cols contribute 0
    # to z, padded H rows have w2 = 0, padded edges point at node 0 and are sliced off).
    h_pad = _round_up(max(hdim, 128), 128)
    n_pad = _round_up(max(n, 128), 128)
    block_k = max(128, min(block_k, _round_up(kdim, 128)))
    k_pad = _round_up(kdim, block_k)

    # Decode edge tile: keep the two [n_pad, e_tile] f32 one-hot temporaries under ~8 MiB.
    e_tile = max(128, min(e_tile, _round_up(max(e, 1), 128)))
    while e_tile > 128 and 2 * n_pad * e_tile * 4 > (8 << 20):
        e_tile //= 2
    e_pad = _round_up(max(e, e_tile), e_tile)
    n_etiles = e_pad // e_tile

    enc_dt = jnp.dtype(encoder_dtype)
    xT = jnp.zeros((k_pad, n_pad), enc_dt).at[:kdim, :n].set(X.T.astype(enc_dt))
    wT = jnp.zeros((h_pad, k_pad), enc_dt).at[:hdim, :kdim].set(weight.T.astype(enc_dt))
    w2 = jnp.zeros((1, h_pad), jnp.float32).at[0, :hdim].set(
        weight_two[:, 0].astype(jnp.float32))
    src = jnp.zeros((1, e_pad), jnp.int32).at[0, :e].set(edges[:, 0])
    dst = jnp.zeros((1, e_pad), jnp.int32).at[0, :e].set(edges[:, 1])

    kt = k_pad // block_k

    # VMEM budget: z^T scratch + double-buffered encoder tiles + decode temporaries.
    esz = enc_dt.itemsize
    vmem_est = (h_pad * n_pad * 4
                + 2 * block_k * n_pad * esz
                + 2 * h_pad * block_k * esz
                + 2 * n_pad * e_tile * 4
                + 8 * h_pad * e_tile * 4
                + 8 * e_pad * 4)
    vmem_limit = int(min(max(2 * vmem_est, 32 << 20), 48 << 20))

    kernel = functools.partial(_fused_slgae_kernel, n_etiles=n_etiles, e_tile=e_tile)

    grid_spec = pltpu.PrefetchScalarGridSpec(
        num_scalar_prefetch=0,
        grid=(kt,),                                               # reduction over input_dim tiles
        in_specs=[
            pl.BlockSpec((block_k, n_pad), lambda kk: (kk, 0)),   # X^T k-tile
            pl.BlockSpec((h_pad, block_k), lambda kk: (0, kk)),   # W^T k-tile
            pl.BlockSpec((1, h_pad), lambda kk: (0, 0)),          # weight_two row
            pl.BlockSpec((1, e_pad), lambda kk: (0, 0)),          # src indices (lane-dense)
            pl.BlockSpec((1, e_pad), lambda kk: (0, 0)),          # dst indices (lane-dense)
        ],
        out_specs=pl.BlockSpec((1, e_pad), lambda kk: (0, 0)),    # resident, written on last step
        scratch_shapes=[pltpu.VMEM((h_pad, n_pad), jnp.float32)], # z^T accumulator
    )

    out_row = pl.pallas_call(
        kernel,
        out_shape=jax.ShapeDtypeStruct((1, e_pad), jnp.float32),
        grid_spec=grid_spec,
        compiler_params=pltpu.CompilerParams(
            dimension_semantics=("arbitrary",),                   # K axis is a reduction
            vmem_limit_bytes=vmem_limit),
    )(xT, wT, w2, src, dst)

    # Lane-dense [1, E_pad] -> the module's [E, 1] layout.
    return out_row[0, :e].reshape(e, 1)


if __name__ == "__main__":
    # Small synthetic shapes consistent with the module's forward.
    N = 16            # number of graph nodes
    INPUT_DIM = 32    # args.input_dim
    HIDDEN1_DIM = 8   # args.hidden1_dim
    E_TRUE = 6
    E_FALSE = 6

    key = jax.random.PRNGKey(0)
    k_x, k_w1, k_w2, k_e1, k_e2 = jax.random.split(key, 5)

    def xavier_uniform(k, fan_in, fan_out):
        limit = jnp.sqrt(6.0 / (fan_in + fan_out))
        return jax.random.uniform(k, (fan_in, fan_out), jnp.float32, -limit, limit)

    X = jax.random.normal(k_x, (N, INPUT_DIM), jnp.float32)
    weight = xavier_uniform(k_w1, INPUT_DIM, HIDDEN1_DIM)        # self.weight
    weight_two = xavier_uniform(k_w2, HIDDEN1_DIM, 1)            # self.weight_two

    train_edges = jax.random.randint(k_e1, (E_TRUE, 2), 0, N, jnp.int32)
    train_false_edges = jax.random.randint(k_e2, (E_FALSE, 2), 0, N, jnp.int32)

    # (adj is an __init__ argument of the module but has no effect on the forward output:
    #  torch.mm(adj, x) is overwritten by the identity activation, so it is omitted.)

    # f32 encoder path (exact module semantics).
    out_f32 = slgae_innerproduct_forward(
        X, weight, weight_two, train_edges, train_false_edges,
        encoder_dtype=jnp.float32)
    # bf16 encoder path (perf option: bf16 MXU operands, f32 accumulation).
    out_bf16 = slgae_innerproduct_forward(
        X, weight, weight_two, train_edges, train_false_edges,
        encoder_dtype=jnp.bfloat16)
    out_f32, out_bf16 = jax.block_until_ready((out_f32, out_bf16))

    # Pure-JAX reference of the exact PyTorch semantics.
    z_ref = X @ weight
    all_e = jnp.concatenate([train_edges, train_false_edges], axis=0)
    pair = z_ref[all_e[:, 0]] * z_ref[all_e[:, 1]]
    ref = jax.nn.sigmoid(pair @ weight_two)

    assert out_f32.shape == (E_TRUE + E_FALSE, 1)
    assert out_bf16.shape == (E_TRUE + E_FALSE, 1)
    assert jnp.allclose(out_f32, ref, atol=1e-4, rtol=1e-4), (
        float(jnp.max(jnp.abs(out_f32 - ref))))
    assert jnp.allclose(out_bf16, ref, atol=2e-2, rtol=2e-2), (
        float(jnp.max(jnp.abs(out_bf16 - ref))))
    print("KERNEL_OK")
</pallas_src>

<mosaic_0001>
module attributes {stable_mosaic.version = 11 : i64} {
  func.func @_fused_slgae_kernel(%arg0: i32, %arg1: memref<128x128xf32, #tpu.memory_space<vmem>>, %arg2: memref<128x128xf32, #tpu.memory_space<vmem>>, %arg3: memref<1x128xf32, #tpu.memory_space<vmem>>, %arg4: memref<1x128xi32, #tpu.memory_space<vmem>>, %arg5: memref<1x128xi32, #tpu.memory_space<vmem>>, %arg6: memref<1x128xf32, #tpu.memory_space<vmem>>, %arg7: memref<128x128xf32, #tpu.memory_space<vmem>>) attributes {dimension_semantics = [#tpu.dimension_semantics<arbitrary>], iteration_bounds = array<i64: 1>, scalar_prefetch = 0 : i64, scratch_operands = 1 : i64, tpu.core_type = #tpu.core_type<tc>, window_params = [{transform_indices = @transform_0, window_bounds = array<i64: 128, 128>}, {transform_indices = @transform_1, window_bounds = array<i64: 128, 128>}, {pipeline_mode = #tpu.pipeline_mode<synchronous>, transform_indices = @transform_2, window_bounds = array<i64: 1, 128>}, {pipeline_mode = #tpu.pipeline_mode<synchronous>, transform_indices = @transform_3, window_bounds = array<i64: 1, 128>}, {pipeline_mode = #tpu.pipeline_mode<synchronous>, transform_indices = @transform_4, window_bounds = array<i64: 1, 128>}, {pipeline_mode = #tpu.pipeline_mode<synchronous>, transform_indices = @transform_5, window_bounds = array<i64: 1, 128>}]} {
    %c0_i32 = arith.constant 0 : i32
    %0 = arith.cmpi eq, %arg0, %c0_i32 : i32
    %1 = arith.extui %0 : i1 to i32
    %c0_i32_0 = arith.constant 0 : i32
    %2 = arith.cmpi ne, %1, %c0_i32_0 : i32
    scf.if %2 {
      %cst_10 = arith.constant 0.000000e+00 : f32
      %12 = vector.broadcast %cst_10 : f32 to vector<128x128xf32>
      %c0_11 = arith.constant 0 : index
      %c0_12 = arith.constant 0 : index
      %13 = vector.load %arg7[%c0_11, %c0_12] : memref<128x128xf32, #tpu.memory_space<vmem>>, vector<128x128xf32>
      tpu.vector_store %arg7[%c0_11, %c0_12], %12 {strides = array<i32>} : memref<128x128xf32, #tpu.memory_space<vmem>>, vector<128x128xf32>,
    } else {
    }
    %c0 = arith.constant 0 : index
    %c0_1 = arith.constant 0 : index
    %3 = vector.load %arg7[%c0, %c0_1] : memref<128x128xf32, #tpu.memory_space<vmem>>, vector<128x128xf32>
    %c0_2 = arith.constant 0 : index
    %c0_3 = arith.constant 0 : index
    %4 = vector.load %arg2[%c0_2, %c0_3] : memref<128x128xf32, #tpu.memory_space<vmem>>, vector<128x128xf32>
    %c0_4 = arith.constant 0 : index
    %c0_5 = arith.constant 0 : index
    %5 = vector.load %arg1[%c0_4, %c0_5] : memref<128x128xf32, #tpu.memory_space<vmem>>, vector<128x128xf32>
    %cst = arith.constant dense<0.000000e+00> : vector<128x128xf32>
    %6 = tpu.matmul %4, %5, %cst {dimension_numbers = #tpu.dot_dimension_numbers<[1], [0], [0], [1], [0, 0, 1, 1], [], []>} : vector<128x128xf32>, vector<128x128xf32>, vector<128x128xf32> -> vector<128x128xf32>
    %7 = arith.addf %3, %6 : vector<128x128xf32>
    %c0_6 = arith.constant 0 : index
    %c0_7 = arith.constant 0 : index
    %8 = vector.load %arg7[%c0_6, %c0_7] : memref<128x128xf32, #tpu.memory_space<vmem>>, vector<128x128xf32>
    tpu.vector_store %arg7[%c0_6, %c0_7], %7 {strides = array<i32>} : memref<128x128xf32, #tpu.memory_space<vmem>>, vector<128x128xf32>,
    %c0_i32_8 = arith.constant 0 : i32
    %9 = arith.cmpi eq, %arg0, %c0_i32_8 : i32
    %10 = arith.extui %9 : i1 to i32
    %c0_i32_9 = arith.constant 0 : i32
    %11 = arith.cmpi ne, %10, %c0_i32_9 : i32
    scf.if %11 {
      %c0_i32_10 = arith.constant 0 : i32
      %c128_i32 = arith.constant 128 : i32
      %12 = arith.muli %c0_i32_10, %c128_i32 : i32
      %13 = tpu.assume_multiple %12, 128 : i32
      %c0_11 = arith.constant 0 : index
      %14 = arith.index_cast %13 : i32 to index
      %15 = vector.load %arg4[%c0_11, %14] : memref<1x128xi32, #tpu.memory_space<vmem>>, vector<1x128xi32>
      %c0_12 = arith.constant 0 : index
      %16 = arith.index_cast %13 : i32 to index
      %17 = vector.load %arg5[%c0_12, %16] : memref<1x128xi32, #tpu.memory_space<vmem>>, vector<1x128xi32>
      %18 = tpu.iota {dimensions = array<i32: 0>} : vector<128x128xi32>
      %19 = vector.broadcast %15 : vector<1x128xi32> to vector<128x128xi32>
      %20 = arith.cmpi eq, %18, %19 : vector<128x128xi32>
      %21 = arith.extui %20 : vector<128x128xi1> to vector<128x128xi32>
      %22 = arith.sitofp %21 : vector<128x128xi32> to vector<128x128xf32>
      %23 = vector.broadcast %17 : vector<1x128xi32> to vector<128x128xi32>
      %24 = arith.cmpi eq, %18, %23 : vector<128x128xi32>
      %25 = arith.extui %24 : vector<128x128xi1> to vector<128x128xi32>
      %26 = arith.sitofp %25 : vector<128x128xi32> to vector<128x128xf32>
      %c0_13 = arith.constant 0 : index
      %c0_14 = arith.constant 0 : index
      %27 = vector.load %arg7[%c0_13, %c0_14] : memref<128x128xf32, #tpu.memory_space<vmem>>, vector<128x128xf32>
      %cst_15 = arith.constant dense<0.000000e+00> : vector<128x128xf32>
      %28 = tpu.matmul %27, %22, %cst_15 {dimension_numbers = #tpu.dot_dimension_numbers<[1], [0], [0], [1], [0, 0, 1, 1], [], []>} : vector<128x128xf32>, vector<128x128xf32>, vector<128x128xf32> -> vector<128x128xf32>
      %cst_16 = arith.constant dense<0.000000e+00> : vector<128x128xf32>
      %29 = tpu.matmul %27, %26, %cst_16 {dimension_numbers = #tpu.dot_dimension_numbers<[1], [0], [0], [1], [0, 0, 1, 1], [], []>} : vector<128x128xf32>, vector<128x128xf32>, vector<128x128xf32> -> vector<128x128xf32>
      %c0_17 = arith.constant 0 : index
      %c0_18 = arith.constant 0 : index
      %30 = vector.load %arg3[%c0_17, %c0_18] : memref<1x128xf32, #tpu.memory_space<vmem>>, vector<1x128xf32>
      %31 = arith.mulf %28, %29 : vector<128x128xf32>
      %cst_19 = arith.constant dense<0.000000e+00> : vector<1x128xf32>
      %32 = tpu.matmul %30, %31, %cst_19 {dimension_numbers = #tpu.dot_dimension_numbers<[1], [0], [0], [1], [0, 0, 1, 1], [], []>} : vector<1x128xf32>, vector<128x128xf32>, vector<1x128xf32> -> vector<1x128xf32>
      %33 = arith.negf %32 : vector<1x128xf32>
      %34 = math.exp %33 : vector<1x128xf32>
      %cst_20 = arith.constant 1.000000e+00 : f32
      %35 = vector.broadcast %cst_20 : f32 to vector<1x128xf32>
      %36 = arith.addf %35, %34 : vector<1x128xf32>
      %37 = arith.divf %35, %36 : vector<1x128xf32>
      %c0_21 = arith.constant 0 : index
      %38 = arith.index_cast %13 : i32 to index
      %39 = vector.load %arg6[%c0_21, %38] : memref<1x128xf32, #tpu.memory_space<vmem>>, vector<1x128xf32>
      tpu.vector_store %arg6[%c0_21, %38], %37 {strides = array<i32>} : memref<1x128xf32, #tpu.memory_space<vmem>>, vector<1x128xf32>,
      %c1_i32 = arith.constant 1 : i32
    } else {
    }
    return
  }
  func.func @transform_0(%arg0: i32) -> (i32, i32) {
    %c0_i32 = arith.constant 0 : i32
    %c0_i32_0 = arith.constant 0 : i32
    return %arg0, %c0_i32 : i32, i32
  }
  func.func @transform_1(%arg0: i32) -> (i32, i32) {
    %c0_i32 = arith.constant 0 : i32
    %c0_i32_0 = arith.constant 0 : i32
    return %c0_i32, %arg0 : i32, i32
  }
  func.func @transform_2(%arg0: i32) -> (i32, i32) {
    %c0_i32 = arith.constant 0 : i32
    %c0_i32_0 = arith.constant 0 : i32
    %c0_i32_1 = arith.constant 0 : i32
    return %c0_i32, %c0_i32_0 : i32, i32
  }
  func.func @transform_3(%arg0: i32) -> (i32, i32) {
    %c0_i32 = arith.constant 0 : i32
    %c0_i32_0 = arith.constant 0 : i32
    %c0_i32_1 = arith.constant 0 : i32
    return %c0_i32, %c0_i32_0 : i32, i32
  }
  func.func @transform_4(%arg0: i32) -> (i32, i32) {
    %c0_i32 = arith.constant 0 : i32
    %c0_i32_0 = arith.constant 0 : i32
    %c0_i32_1 = arith.constant 0 : i32
    return %c0_i32, %c0_i32_0 : i32, i32
  }
  func.func @transform_5(%arg0: i32) -> (i32, i32) {
    %c0_i32 = arith.constant 0 : i32
    %c0_i32_0 = arith.constant 0 : i32
    %c0_i32_1 = arith.constant 0 : i32
    return %c0_i32, %c0_i32_0 : i32, i32
  }
}

</mosaic_0001>

<llo_original>
// kernel: tpu_custom_call.1
$region0: #{tpu_custom_call.1}
  #allocation0 [shape = 'u32[]', space=smem, size = 0x4, offset = 0x4, fixed_abs, tag = 'smem constant byte address 0x4 - core index']
  #allocation1 [shape = 'u32[144,128]{1,0:T(1,128)}', space=vmem, size = 0x12000, scoped, tag = 'internal scratch']
  #allocation2 [shape = 'f32[128,128]{1,0:T(8,128)}', space=vmem, size = 0x10000, scoped, tag = 'scratch operand']
  %s0 = inlined_call_operand.hbm [shape: f32[128,128], index: 0, kind: input, shape index: {}]
  %s1 = inlined_call_operand.hbm [shape: f32[128,128], index: 1, kind: input, shape index: {}]
  %s2 = inlined_call_operand.vmem [shape: f32[1,128], index: 2, kind: input, shape index: {}]
  %s3 = inlined_call_operand.vmem [shape: s32[1,128], index: 3, kind: input, shape index: {}]
  %s4 = inlined_call_operand.vmem [shape: s32[1,128], index: 4, kind: input, shape index: {}]
  %s5 = inlined_call_operand.hbm [shape: f32[1,128], index: 5, kind: output, shape index: {}]
  %s6 = sld [smem:[#allocation0]]
  $region46: #{tpu_custom_call.1} parent=0
    _
  %s8 = ssub.s32 1, %s6
  %s9 = scalar_select 0, %s8, %s6
  $region1: #{tpu_custom_call.1} parent=0
    #allocation3 [shape = 'u8[65536]{0}', space=vmem, size = 0x10000, scoped, tag = 'input window, operand 0, single buffered']
    #allocation4 [shape = 's32[1]{0}', space=sflag, size = 0x4, scoped, tag = 'scoped memory for tpu_custom_call.1']
    #allocation5 [shape = 's32[1]{0}', space=sflag, size = 0x4, scoped, tag = 'scoped memory for tpu_custom_call.1']
    #allocation6 [shape = 'u8[65536]{0}', space=vmem, size = 0x10000, scoped, tag = 'input window, operand 1, single buffered']
    #allocation7 [shape = 's32[1]{0}', space=sflag, size = 0x4, scoped, tag = 'scoped memory for tpu_custom_call.1']
    #allocation8 [shape = 'u8[512]{0}', space=vmem, size = 0x400, scoped, tag = 'output window, operand 0, single buffered']
    %10 = vsyncpa [#allocation4], 0
    %11 = vsyncpa [#allocation7], 0
    %12 = vsyncpa [#allocation5], 0
    // Predicated region
    $region2: #{tpu_custom_call.1} parent=1 // pred_check
      _
    $region3: #{tpu_custom_call.1} parent=1 // pred_check_branch
      %14 = sbr.rel (0) target = $region5
    $region4: #{tpu_custom_call.1} parent=1 // pred_region
      %s16 = ssub.s32 2048, 2048
      %17 = vsyncadd [#allocation4], %s16
      %s18 = sshll.u32 [#allocation3], 4
      %s19 = int_to_ptr.vmem [resolvable:$true] %s18
      %24 = dma.hbm_to_vmem [thread:$0]  %s0, 2048, %s19, [#allocation4], 128, 128, 8
    $region5: #{tpu_custom_call.1} parent=1 // pred_fallthru
      _
    // Predicated region
    $region6: #{tpu_custom_call.1} parent=1 // pred_check
      _
    $region7: #{tpu_custom_call.1} parent=1 // pred_check_branch
      %26 = sbr.rel (0) target = $region9
    $region8: #{tpu_custom_call.1} parent=1 // pred_region
      %s28 = ssub.s32 2048, 2048
      %29 = vsyncadd [#allocation7], %s28
      %s30 = sshll.u32 [#allocation6], 4
      %s31 = int_to_ptr.vmem [resolvable:$true] %s30
      %36 = dma.hbm_to_vmem [thread:$0]  %s1, 2048, %s31, [#allocation7], 128, 128, 8
    $region9: #{tpu_custom_call.1} parent=1 // pred_fallthru
      _
    // Predicated region
    $region10: #{tpu_custom_call.1} parent=1 // pred_check
      _
    $region11: #{tpu_custom_call.1} parent=1 // pred_check_branch
      %38 = sbr.rel (0) target = $region13
    $region12: #{tpu_custom_call.1} parent=1 // pred_region
      _
    $region13: #{tpu_custom_call.1} parent=1 // pred_fallthru
      _
    // Predicated region
    $region14: #{tpu_custom_call.1} parent=1 // pred_check
      _
    $region15: #{tpu_custom_call.1} parent=1 // pred_check_branch
      %40 = sbr.rel (0) target = $region17
    $region16: #{tpu_custom_call.1} parent=1 // pred_region
      _
    $region17: #{tpu_custom_call.1} parent=1 // pred_fallthru
      _
    // Predicated region
    $region18: #{tpu_custom_call.1} parent=1 // pred_check
      _
    $region19: #{tpu_custom_call.1} parent=1 // pred_check_branch
      %42 = sbr.rel (0) target = $region21
    $region20: #{tpu_custom_call.1} parent=1 // pred_region
      _
    $region21: #{tpu_custom_call.1} parent=1 // pred_fallthru
      _
    // Predicated region
    $region22: #{tpu_custom_call.1} parent=1 // pred_check
      _
    $region23: #{tpu_custom_call.1} parent=1 // pred_check_branch
      %44 = sbr.rel (0) target = $region25
    $region24: #{tpu_custom_call.1} parent=1 // pred_region
      %45 = dma.done [#allocation4], 2048
    $region25: #{tpu_custom_call.1} parent=1 // pred_fallthru
      _
    // Predicated region
    $region26: #{tpu_custom_call.1} parent=1 // pred_check
      _
    $region27: #{tpu_custom_call.1} parent=1 // pred_check_branch
      %47 = sbr.rel (0) target = $region29
    $region28: #{tpu_custom_call.1} parent=1 // pred_region
      %48 = dma.done [#allocation7], 2048
    $region29: #{tpu_custom_call.1} parent=1 // pred_fallthru
      _
    %p49 = scmp.eq.s32.totalorder 0, 0
    // Predicated region
    $region30: #{tpu_custom_call.1} parent=1 // pred_check
      %p50 = pneg %p49
    $region31: #{tpu_custom_call.1} parent=1 // pred_check_branch
      %52 = sbr.rel (%p50) target = $region33
    $region32: #{tpu_custom_call.1} parent=1 // pred_region
      %53 = vst [vmem:[#allocation2] sm:$0xff] 0.0
      %54 = vst [vmem:[#allocation2 + $0x8] sm:$0xff] 0.0
      %55 = vst [vmem:[#allocation2 + $0x10] sm:$0xff] 0.0
      %56 = vst [vmem:[#allocation2 + $0x18] sm:$0xff] 0.0
      %57 = vst [vmem:[#allocation2 + $0x20] sm:$0xff] 0.0
      %58 = vst [vmem:[#allocation2 + $0x28] sm:$0xff] 0.0
      %59 = vst [vmem:[#allocation2 + $0x30] sm:$0xff] 0.0
      %60 = vst [vmem:[#allocation2 + $0x38] sm:$0xff] 0.0
      %61 = vst [vmem:[#allocation2 + $0x40] sm:$0xff] 0.0
      %62 = vst [vmem:[#allocation2 + $0x48] sm:$0xff] 0.0
      %63 = vst [vmem:[#allocation2 + $0x50] sm:$0xff] 0.0
      %64 = vst [vmem:[#allocation2 + $0x58] sm:$0xff] 0.0
      %65 = vst [vmem:[#allocation2 + $0x60] sm:$0xff] 0.0
      %66 = vst [vmem:[#allocation2 + $0x68] sm:$0xff] 0.0
      %67 = vst [vmem:[#allocation2 + $0x70] sm:$0xff] 0.0
      %68 = vst [vmem:[#allocation2 + $0x78] sm:$0xff] 0.0
    $region33: #{tpu_custom_call.1} parent=1 // pred_fallthru
      _
    %v69 = vld [vmem:[#allocation2] sm:$0xff]
    %v70 = vld [vmem:[#allocation2 + $0x8] sm:$0xff]
    %v71 = vld [vmem:[#allocation2 + $0x10] sm:$0xff]
    %v72 = vld [vmem:[#allocation2 + $0x18] sm:$0xff]
    %v73 = vld [vmem:[#allocation2 + $0x20] sm:$0xff]
    %v74 = vld [vmem:[#allocation2 + $0x28] sm:$0xff]
    %v75 = vld [vmem:[#allocation2 + $0x30] sm:$0xff]
    %v76 = vld [vmem:[#allocation2 + $0x38] sm:$0xff]
    %v77 = vld [vmem:[#allocation2 + $0x40] sm:$0xff]
    %v78 = vld [vmem:[#allocation2 + $0x48] sm:$0xff]
    %v79 = vld [vmem:[#allocation2 + $0x50] sm:$0xff]
    %v80 = vld [vmem:[#allocation2 + $0x58] sm:$0xff]
    %v81 = vld [vmem:[#allocation2 + $0x60] sm:$0xff]
    %v82 = vld [vmem:[#allocation2 + $0x68] sm:$0xff]
    %v83 = vld [vmem:[#allocation2 + $0x70] sm:$0xff]
    %v84 = vld [vmem:[#allocation2 + $0x78] sm:$0xff]
    %v85 = vld [vmem:[#allocation6] sm:$0xff]
    %v86 = vld [vmem:[#allocation6 + $0x8] sm:$0xff]
    %v87 = vld [vmem:[#allocation6 + $0x10] sm:$0xff]
    %v88 = vld [vmem:[#allocation6 + $0x18] sm:$0xff]
    %v89 = vld [vmem:[#allocation6 + $0x20] sm:$0xff]
    %v90 = vld [vmem:[#allocation6 + $0x28] sm:$0xff]
    %v91 = vld [vmem:[#allocation6 + $0x30] sm:$0xff]
    %v92 = vld [vmem:[#allocation6 + $0x38] sm:$0xff]
    %v93 = vld [vmem:[#allocation6 + $0x40] sm:$0xff]
    %v94 = vld [vmem:[#allocation6 + $0x48] sm:$0xff]
    %v95 = vld [vmem:[#allocation6 + $0x50] sm:$0xff]
    %v96 = vld [vmem:[#allocation6 + $0x58] sm:$0xff]
    %v97 = vld [vmem:[#allocation6 + $0x60] sm:$0xff]
    %v98 = vld [vmem:[#allocation6 + $0x68] sm:$0xff]
    %v99 = vld [vmem:[#allocation6 + $0x70] sm:$0xff]
    %v100 = vld [vmem:[#allocation6 + $0x78] sm:$0xff]
    %v101 = vld [vmem:[#allocation3] sm:$0xff]
    %v102 = vld [vmem:[#allocation3 + $0x8] sm:$0xff]
    %v103 = vld [vmem:[#allocation3 + $0x10] sm:$0xff]
    %v104 = vld [vmem:[#allocation3 + $0x18] sm:$0xff]
    %v105 = vld [vmem:[#allocation3 + $0x20] sm:$0xff]
    %v106 = vld [vmem:[#allocation3 + $0x28] sm:$0xff]
    %v107 = vld [vmem:[#allocation3 + $0x30] sm:$0xff]
    %v108 = vld [vmem:[#allocation3 + $0x38] sm:$0xff]
    %v109 = vld [vmem:[#allocation3 + $0x40] sm:$0xff]
    %v110 = vld [vmem:[#allocation3 + $0x48] sm:$0xff]
    %v111 = vld [vmem:[#allocation3 + $0x50] sm:$0xff]
    %v112 = vld [vmem:[#allocation3 + $0x58] sm:$0xff]
    %v113 = vld [vmem:[#allocation3 + $0x60] sm:$0xff]
    %v114 = vld [vmem:[#allocation3 + $0x68] sm:$0xff]
    %v115 = vld [vmem:[#allocation3 + $0x70] sm:$0xff]
    %v116 = vld [vmem:[#allocation3 + $0x78] sm:$0xff]
    %117 = vmatprep.subr.mxu0 0.0
    %118 = vmatpush1.msra.mxu0 %v116
    %119 = vmatprep.subr.mxu0 0.0
    %120 = vmatpush1.msra.mxu0 %v115
    %121 = vmatprep.subr.mxu0 0.0
    %122 = vmatpush1.msra.mxu0 %v114
    %123 = vmatprep.subr.mxu0 0.0
    %124 = vmatpush1.msra.mxu0 %v113
    %125 = vmatprep.subr.mxu0 0.0
    %126 = vmatpush1.msra.mxu0 %v112
    %127 = vmatprep.subr.mxu0 0.0
    %128 = vmatpush1.msra.mxu0 %v111
    %129 = vmatprep.subr.mxu0 0.0
    %130 = vmatpush1.msra.mxu0 %v110
    %131 = vmatprep.subr.mxu0 0.0
    %132 = vmatpush1.msra.mxu0 %v109
    %133 = vmatprep.subr.mxu0 0.0
    %134 = vmatpush1.msra.mxu0 %v108
    %135 = vmatprep.subr.mxu0 0.0
    %136 = vmatpush1.msra.mxu0 %v107
    %137 = vmatprep.subr.mxu0 0.0
    %138 = vmatpush1.msra.mxu0 %v106
    %139 = vmatprep.subr.mxu0 0.0
    %140 = vmatpush1.msra.mxu0 %v105
    %141 = vmatprep.subr.mxu0 0.0
    %142 = vmatpush1.msra.mxu0 %v104
    %143 = vmatprep.subr.mxu0 0.0
    %144 = vmatpush1.msra.mxu0 %v103
    %145 = vmatprep.subr.mxu0 0.0
    %146 = vmatpush1.msra.mxu0 %v102
    %147 = vmatprep.subr.mxu0 0.0
    %148 = vmatpush1.msra.mxu0 %v101
    %149 = vmatprep.subr.mxu0 0.0
    %150 = vmatpush2.msra.mxu0 0.0
    %151 = vmatprep.subr.mxu0 0.0
    %152 = vmatpush2.msra.mxu0 0.0
    %153 = vmatprep.subr.mxu0 0.0
    %154 = vmatpush2.msra.mxu0 0.0
    %155 = vmatprep.subr.mxu0 0.0
    %156 = vmatpush2.msra.mxu0 0.0
    %157 = vmatprep.subr.mxu0 0.0
    %158 = vmatpush2.msra.mxu0 0.0
    %159 = vmatprep.subr.mxu0 0.0
    %160 = vmatpush2.msra.mxu0 0.0
    %161 = vmatprep.subr.mxu0 0.0
    %162 = vmatpush2.msra.mxu0 0.0
    %163 = vmatprep.subr.mxu0 0.0
    %164 = vmatpush2.msra.mxu0 0.0
    %165 = vmatprep.subr.mxu0 0.0
    %166 = vmatpush2.msra.mxu0 0.0
    %167 = vmatprep.subr.mxu0 0.0
    %168 = vmatpush2.msra.mxu0 0.0
    %169 = vmatprep.subr.mxu0 0.0
    %170 = vmatpush2.msra.mxu0 0.0
    %171 = vmatprep.subr.mxu0 0.0
    %172 = vmatpush2.msra.mxu0 0.0
    %173 = vmatprep.subr.mxu0 0.0
    %174 = vmatpush2.msra.mxu0 0.0
    %175 = vmatprep.subr.mxu0 0.0
    %176 = vmatpush2.msra.mxu0 0.0
    %177 = vmatprep.subr.mxu0 0.0
    %178 = vmatpush2.msra.mxu0 0.0
    %179 = vmatprep.subr.mxu0 0.0
    %180 = vmatpush2.msra.mxu0 0.0
    %181 = vmatprep.mubr.f32.mxu0 0.0
    %182 = vmatmul.mubr.f32.gmra.mxu0 %v85
    %v183 = vpop.f32.mrf.mxu0
    %v184 = vadd.f32 0.0, %v183
    %v185 = vpop.f32.mrf.mxu0
    %186 = vmatprep.mubr.f32.mxu0 0.0
    %187 = vmatmul.mubr.f32.gmra.mxu0 %v86
    %v188 = vpop.f32.mrf.mxu0
    %v189 = vadd.f32 0.0, %v188
    %v190 = vpop.f32.mrf.mxu0
    %191 = vmatprep.mubr.f32.mxu0 0.0
    %192 = vmatmul.mubr.f32.gmra.mxu0 %v87
    %v193 = vpop.f32.mrf.mxu0
    %v194 = vadd.f32 0.0, %v193
    %v195 = vpop.f32.mrf.mxu0
    %196 = vmatprep.mubr.f32.mxu0 0.0
    %197 = vmatmul.mubr.f32.gmra.mxu0 %v88
    %v198 = vpop.f32.mrf.mxu0
    %v199 = vadd.f32 0.0, %v198
    %v200 = vpop.f32.mrf.mxu0
    %201 = vmatprep.mubr.f32.mxu0 0.0
    %202 = vmatmul.mubr.f32.gmra.mxu0 %v89
    %v203 = vpop.f32.mrf.mxu0
    %v204 = vadd.f32 0.0, %v203
    %v205 = vpop.f32.mrf.mxu0
    %206 = vmatprep.mubr.f32.mxu0 0.0
    %207 = vmatmul.mubr.f32.gmra.mxu0 %v90
    %v208 = vpop.f32.mrf.mxu0
    %v209 = vadd.f32 0.0, %v208
    %v210 = vpop.f32.mrf.mxu0
    %211 = vmatprep.mubr.f32.mxu0 0.0
    %212 = vmatmul.mubr.f32.gmra.mxu0 %v91
    %v213 = vpop.f32.mrf.mxu0
    %v214 = vadd.f32 0.0, %v213
    %v215 = vpop.f32.mrf.mxu0
    %216 = vmatprep.mubr.f32.mxu0 0.0
    %217 = vmatmul.mubr.f32.gmra.mxu0 %v92
    %v218 = vpop.f32.mrf.mxu0
    %v219 = vadd.f32 0.0, %v218
    %v220 = vpop.f32.mrf.mxu0
    %221 = vmatprep.mubr.f32.mxu0 0.0
    %222 = vmatmul.mubr.f32.gmra.mxu0 %v93
    %v223 = vpop.f32.mrf.mxu0
    %v224 = vadd.f32 0.0, %v223
    %v225 = vpop.f32.mrf.mxu0
    %226 = vmatprep.mubr.f32.mxu0 0.0
    %227 = vmatmul.mubr.f32.gmra.mxu0 %v94
    %v228 = vpop.f32.mrf.mxu0
    %v229 = vadd.f32 0.0, %v228
    %v230 = vpop.f32.mrf.mxu0
    %231 = vmatprep.mubr.f32.mxu0 0.0
    %232 = vmatmul.mubr.f32.gmra.mxu0 %v95
    %v233 = vpop.f32.mrf.mxu0
    %v234 = vadd.f32 0.0, %v233
    %v235 = vpop.f32.mrf.mxu0
    %236 = vmatprep.mubr.f32.mxu0 0.0
    %237 = vmatmul.mubr.f32.gmra.mxu0 %v96
    %v238 = vpop.f32.mrf.mxu0
    %v239 = vadd.f32 0.0, %v238
    %v240 = vpop.f32.mrf.mxu0
    %241 = vmatprep.mubr.f32.mxu0 0.0
    %242 = vmatmul.mubr.f32.gmra.mxu0 %v97
    %v243 = vpop.f32.mrf.mxu0
    %v244 = vadd.f32 0.0, %v243
    %v245 = vpop.f32.mrf.mxu0
    %246 = vmatprep.mubr.f32.mxu0 0.0
    %247 = vmatmul.mubr.f32.gmra.mxu0 %v98
    %v248 = vpop.f32.mrf.mxu0
    %v249 = vadd.f32 0.0, %v248
    %v250 = vpop.f32.mrf.mxu0
    %251 = vmatprep.mubr.f32.mxu0 0.0
    %252 = vmatmul.mubr.f32.gmra.mxu0 %v99
    %v253 = vpop.f32.mrf.mxu0
    %v254 = vadd.f32 0.0, %v253
    %v255 = vpop.f32.mrf.mxu0
    %256 = vmatprep.mubr.f32.mxu0 0.0
    %257 = vmatmul.mubr.f32.gmra.mxu0 %v100
    %v258 = vpop.f32.mrf.mxu0
    %v259 = vadd.f32 0.0, %v258
    %v260 = vpop.f32.mrf.mxu0
    %261 = vdwg.mxu0
    %v262 = vadd.f32 %v69, %v184
    %v263 = vadd.f32 %v70, %v189
    %v264 = vadd.f32 %v71, %v194
    %v265 = vadd.f32 %v72, %v199
    %v266 = vadd.f32 %v73, %v204
    %v267 = vadd.f32 %v74, %v209
    %v268 = vadd.f32 %v75, %v214
    %v269 = vadd.f32 %v76, %v219
    %v270 = vadd.f32 %v77, %v224
    %v271 = vadd.f32 %v78, %v229
    %v272 = vadd.f32 %v79, %v234
    %v273 = vadd.f32 %v80, %v239
    %v274 = vadd.f32 %v81, %v244
    %v275 = vadd.f32 %v82, %v249
    %v276 = vadd.f32 %v83, %v254
    %v277 = vadd.f32 %v84, %v259
    %278 = vst [vmem:[#allocation2] sm:$0xff] %v262
    %279 = vst [vmem:[#allocation2 + $0x8] sm:$0xff] %v263
    %280 = vst [vmem:[#allocation2 + $0x10] sm:$0xff] %v264
    %281 = vst [vmem:[#allocation2 + $0x18] sm:$0xff] %v265
    %282 = vst [vmem:[#allocation2 + $0x20] sm:$0xff] %v266
    %283 = vst [vmem:[#allocation2 + $0x28] sm:$0xff] %v267
    %284 = vst [vmem:[#allocation2 + $0x30] sm:$0xff] %v268
    %285 = vst [vmem:[#allocation2 + $0x38] sm:$0xff] %v269
    %286 = vst [vmem:[#allocation2 + $0x40] sm:$0xff] %v270
    %287 = vst [vmem:[#allocation2 + $0x48] sm:$0xff] %v271
    %288 = vst [vmem:[#allocation2 + $0x50] sm:$0xff] %v272
    %289 = vst [vmem:[#allocation2 + $0x58] sm:$0xff] %v273
    %290 = vst [vmem:[#allocation2 + $0x60] sm:$0xff] %v274
    %291 = vst [vmem:[#allocation2 + $0x68] sm:$0xff] %v275
    %292 = vst [vmem:[#allocation2 + $0x70] sm:$0xff] %v276
    %293 = vst [vmem:[#allocation2 + $0x78] sm:$0xff] %v277
    // Predicated region
    $region34: #{tpu_custom_call.1} parent=1 // pred_check
      %p294 = pneg %p49
    $region35: #{tpu_custom_call.1} parent=1 // pred_check_branch
      %296 = sbr.rel (%p294) target = $region37
    $region36: #{tpu_custom_call.1} parent=1 // pred_region
      %v297 = vld [vmem:[%s3] sm:$0x1]
      %v298 = vld [vmem:[%s4] sm:$0x1]
      %v299 = vlaneseq
      %v300 = vshrl.u32 %v299, 7
      %v301 = vadd.s32 %v300, 8
      %v302 = vadd.s32 %v300, 16
      %v303 = vadd.s32 %v300, 24
      %v304 = vadd.s32 %v300, 32
      %v305 = vadd.s32 %v300, 40
      %v306 = vadd.s32 %v300, 48
      %v307 = vadd.s32 %v300, 56
      %v308 = vadd.s32 %v300, 64
      %v309 = vadd.s32 %v300, 72
      %v310 = vadd.s32 %v300, 80
      %v311 = vadd.s32 %v300, 88
      %v312 = vadd.s32 %v300, 96
      %v313 = vadd.s32 %v300, 104
      %v314 = vadd.s32 %v300, 112
      %v315 = vadd.s32 %v300, 120
      %v316 = vlaneseq
      %v317 = vshrl.u32 %v316, 7
      %v318 = vsub.s32 0, %v317
      %v319 = vrot.slane %v297, %v318
      %vm320 = vcmp.eq.s32.totalorder %v300, %v319
      %vm321 = vcmp.eq.s32.totalorder %v301, %v319
      %vm322 = vcmp.eq.s32.totalorder %v302, %v319
      %vm323 = vcmp.eq.s32.totalorder %v303, %v319
      %vm324 = vcmp.eq.s32.totalorder %v304, %v319
      %vm325 = vcmp.eq.s32.totalorder %v305, %v319
      %vm326 = vcmp.eq.s32.totalorder %v306, %v319
      %vm327 = vcmp.eq.s32.totalorder %v307, %v319
      %vm328 = vcmp.eq.s32.totalorder %v308, %v319
      %vm329 = vcmp.eq.s32.totalorder %v309, %v319
      %vm330 = vcmp.eq.s32.totalorder %v310, %v319
      %vm331 = vcmp.eq.s32.totalorder %v311, %v319
      %vm332 = vcmp.eq.s32.totalorder %v312, %v319
      %vm333 = vcmp.eq.s32.totalorder %v313, %v319
      %vm334 = vcmp.eq.s32.totalorder %v314, %v319
      %vm335 = vcmp.eq.s32.totalorder %v315, %v319
      %v336 = vsel %vm320, 1, 0
      %v337 = vsel %vm321, 1, 0
      %v338 = vsel %vm322, 1, 0
      %v339 = vsel %vm323, 1, 0
      %v340 = vsel %vm324, 1, 0
      %v341 = vsel %vm325, 1, 0
      %v342 = vsel %vm326, 1, 0
      %v343 = vsel %vm327, 1, 0
      %v344 = vsel %vm328, 1, 0
      %v345 = vsel %vm329, 1, 0
      %v346 = vsel %vm330, 1, 0
      %v347 = vsel %vm331, 1, 0
      %v348 = vsel %vm332, 1, 0
      %v349 = vsel %vm333, 1, 0
      %v350 = vsel %vm334, 1, 0
      %v351 = vsel %vm335, 1, 0
      %v352 = vcvt.s32.f32 %v336
      %v353 = vcvt.s32.f32 %v337
      %v354 = vcvt.s32.f32 %v338
      %v355 = vcvt.s32.f32 %v339
      %v356 = vcvt.s32.f32 %v340
      %v357 = vcvt.s32.f32 %v341
      %v358 = vcvt.s32.f32 %v342
      %v359 = vcvt.s32.f32 %v343
      %v360 = vcvt.s32.f32 %v344
      %v361 = vcvt.s32.f32 %v345
      %v362 = vcvt.s32.f32 %v346
      %v363 = vcvt.s32.f32 %v347
      %v364 = vcvt.s32.f32 %v348
      %v365 = vcvt.s32.f32 %v349
      %v366 = vcvt.s32.f32 %v350
      %v367 = vcvt.s32.f32 %v351
      %v368 = vlaneseq
      %v369 = vshrl.u32 %v368, 7
      %v370 = vsub.s32 0, %v369
      %v371 = vrot.slane %v298, %v370
      %vm372 = vcmp.eq.s32.totalorder %v300, %v371
      %vm373 = vcmp.eq.s32.totalorder %v301, %v371
      %vm374 = vcmp.eq.s32.totalorder %v302, %v371
      %vm375 = vcmp.eq.s32.totalorder %v303, %v371
      %vm376 = vcmp.eq.s32.totalorder %v304, %v371
      %vm377 = vcmp.eq.s32.totalorder %v305, %v371
      %vm378 = vcmp.eq.s32.totalorder %v306, %v371
      %vm379 = vcmp.eq.s32.totalorder %v307, %v371
      %vm380 = vcmp.eq.s32.totalorder %v308, %v371
      %vm381 = vcmp.eq.s32.totalorder %v309, %v371
      %vm382 = vcmp.eq.s32.totalorder %v310, %v371
      %vm383 = vcmp.eq.s32.totalorder %v311, %v371
      %vm384 = vcmp.eq.s32.totalorder %v312, %v371
      %vm385 = vcmp.eq.s32.totalorder %v313, %v371
      %vm386 = vcmp.eq.s32.totalorder %v314, %v371
      %vm387 = vcmp.eq.s32.totalorder %v315, %v371
      %v388 = vsel %vm372, 1, 0
      %v389 = vsel %vm373, 1, 0
      %v390 = vsel %vm374, 1, 0
      %v391 = vsel %vm375, 1, 0
      %v392 = vsel %vm376, 1, 0
      %v393 = vsel %vm377, 1, 0
      %v394 = vsel %vm378, 1, 0
      %v395 = vsel %vm379, 1, 0
      %v396 = vsel %vm380, 1, 0
      %v397 = vsel %vm381, 1, 0
      %v398 = vsel %vm382, 1, 0
      %v399 = vsel %vm383, 1, 0
      %v400 = vsel %vm384, 1, 0
      %v401 = vsel %vm385, 1, 0
      %v402 = vsel %vm386, 1, 0
      %v403 = vsel %vm387, 1, 0
      %v404 = vcvt.s32.f32 %v388
      %v405 = vcvt.s32.f32 %v389
      %v406 = vcvt.s32.f32 %v390
      %v407 = vcvt.s32.f32 %v391
      %v408 = vcvt.s32.f32 %v392
      %v409 = vcvt.s32.f32 %v393
      %v410 = vcvt.s32.f32 %v394
      %v411 = vcvt.s32.f32 %v395
      %v412 = vcvt.s32.f32 %v396
      %v413 = vcvt.s32.f32 %v397
      %v414 = vcvt.s32.f32 %v398
      %v415 = vcvt.s32.f32 %v399
      %v416 = vcvt.s32.f32 %v400
      %v417 = vcvt.s32.f32 %v401
      %v418 = vcvt.s32.f32 %v402
      %v419 = vcvt.s32.f32 %v403
      %v420 = vld [vmem:[#allocation2] sm:$0xff]
      %v421 = vld [vmem:[#allocation2 + $0x8] sm:$0xff]
      %v422 = vld [vmem:[#allocation2 + $0x10] sm:$0xff]
      %v423 = vld [vmem:[#allocation2 + $0x18] sm:$0xff]
      %v424 = vld [vmem:[#allocation2 + $0x20] sm:$0xff]
      %v425 = vld [vmem:[#allocation2 + $0x28] sm:$0xff]
      %v426 = vld [vmem:[#allocation2 + $0x30] sm:$0xff]
      %v427 = vld [vmem:[#allocation2 + $0x38] sm:$0xff]
      %v428 = vld [vmem:[#allocation2 + $0x40] sm:$0xff]
      %v429 = vld [vmem:[#allocation2 + $0x48] sm:$0xff]
      %v430 = vld [vmem:[#allocation2 + $0x50] sm:$0xff]
      %v431 = vld [vmem:[#allocation2 + $0x58] sm:$0xff]
      %v432 = vld [vmem:[#allocation2 + $0x60] sm:$0xff]
      %v433 = vld [vmem:[#allocation2 + $0x68] sm:$0xff]
      %v434 = vld [vmem:[#allocation2 + $0x70] sm:$0xff]
      %v435 = vld [vmem:[#allocation2 + $0x78] sm:$0xff]
      %436 = vmatprep.subr.mxu0 0.0
      %437 = vmatpush1.msra.mxu0 %v367
      %438 = vmatprep.subr.mxu0 0.0
      %439 = vmatpush1.msra.mxu0 %v366
      %440 = vmatprep.subr.mxu0 0.0
      %441 = vmatpush1.msra.mxu0 %v365
      %442 = vmatprep.subr.mxu0 0.0
      %443 = vmatpush1.msra.mxu0 %v364
      %444 = vmatprep.subr.mxu0 0.0
      %445 = vmatpush1.msra.mxu0 %v363
      %446 = vmatprep.subr.mxu0 0.0
      %447 = vmatpush1.msra.mxu0 %v362
      %448 = vmatprep.subr.mxu0 0.0
      %449 = vmatpush1.msra.mxu0 %v361
      %450 = vmatprep.subr.mxu0 0.0
      %451 = vmatpush1.msra.mxu0 %v360
      %452 = vmatprep.subr.mxu0 0.0
      %453 = vmatpush1.msra.mxu0 %v359
      %454 = vmatprep.subr.mxu0 0.0
      %455 = vmatpush1.msra.mxu0 %v358
      %456 = vmatprep.subr.mxu0 0.0
      %457 = vmatpush1.msra.mxu0 %v357
      %458 = vmatprep.subr.mxu0 0.0
      %459 = vmatpush1.msra.mxu0 %v356
      %460 = vmatprep.subr.mxu0 0.0
      %461 = vmatpush1.msra.mxu0 %v355
      %462 = vmatprep.subr.mxu0 0.0
      %463 = vmatpush1.msra.mxu0 %v354
      %464 = vmatprep.subr.mxu0 0.0
      %465 = vmatpush1.msra.mxu0 %v353
      %466 = vmatprep.subr.mxu0 0.0
      %467 = vmatpush1.msra.mxu0 %v352
      %468 = vmatprep.subr.mxu0 0.0
      %469 = vmatpush2.msra.mxu0 0.0
      %470 = vmatprep.subr.mxu0 0.0
      %471 = vmatpush2.msra.mxu0 0.0
      %472 = vmatprep.subr.mxu0 0.0
      %473 = vmatpush2.msra.mxu0 0.0
      %474 = vmatprep.subr.mxu0 0.0
      %475 = vmatpush2.msra.mxu0 0.0
      %476 = vmatprep.subr.mxu0 0.0
      %477 = vmatpush2.msra.mxu0 0.0
      %478 = vmatprep.subr.mxu0 0.0
      %479 = vmatpush2.msra.mxu0 0.0
      %480 = vmatprep.subr.mxu0 0.0
      %481 = vmatpush2.msra.mxu0 0.0
      %482 = vmatprep.subr.mxu0 0.0
      %483 = vmatpush2.msra.mxu0 0.0
      %484 = vmatprep.subr.mxu0 0.0
      %485 = vmatpush2.msra.mxu0 0.0
      %486 = vmatprep.subr.mxu0 0.0
      %487 = vmatpush2.msra.mxu0 0.0
      %488 = vmatprep.subr.mxu0 0.0
      %489 = vmatpush2.msra.mxu0 0.0
      %490 = vmatprep.subr.mxu0 0.0
      %491 = vmatpush2.msra.mxu0 0.0
      %492 = vmatprep.subr.mxu0 0.0
      %493 = vmatpush2.msra.mxu0 0.0
      %494 = vmatprep.subr.mxu0 0.0
      %495 = vmatpush2.msra.mxu0 0.0
      %496 = vmatprep.subr.mxu0 0.0
      %497 = vmatpush2.msra.mxu0 0.0
      %498 = vmatprep.subr.mxu0 0.0
      %499 = vmatpush2.msra.mxu0 0.0
      %500 = vmatprep.mubr.f32.mxu0 0.0
      %501 = vmatmul.mubr.f32.gmra.mxu0 %v420
      %v502 = vpop.f32.mrf.mxu0
      %v503 = vadd.f32 0.0, %v502
      %v504 = vpop.f32.mrf.mxu0
      %505 = vmatprep.mubr.f32.mxu0 0.0
      %506 = vmatmul.mubr.f32.gmra.mxu0 %v421
      %v507 = vpop.f32.mrf.mxu0
      %v508 = vadd.f32 0.0, %v507
      %v509 = vpop.f32.mrf.mxu0
      %510 = vmatprep.mubr.f32.mxu0 0.0
      %511 = vmatmul.mubr.f32.gmra.mxu0 %v422
      %v512 = vpop.f32.mrf.mxu0
      %v513 = vadd.f32 0.0, %v512
      %v514 = vpop.f32.mrf.mxu0
      %515 = vmatprep.mubr.f32.mxu0 0.0
      %516 = vmatmul.mubr.f32.gmra.mxu0 %v423
      %v517 = vpop.f32.mrf.mxu0
      %v518 = vadd.f32 0.0, %v517
      %v519 = vpop.f32.mrf.mxu0
      %520 = vmatprep.mubr.f32.mxu0 0.0
      %521 = vmatmul.mubr.f32.gmra.mxu0 %v424
      %v522 = vpop.f32.mrf.mxu0
      %v523 = vadd.f32 0.0, %v522
      %v524 = vpop.f32.mrf.mxu0
      %525 = vmatprep.mubr.f32.mxu0 0.0
      %526 = vmatmul.mubr.f32.gmra.mxu0 %v425
      %v527 = vpop.f32.mrf.mxu0
      %v528 = vadd.f32 0.0, %v527
      %v529 = vpop.f32.mrf.mxu0
      %530 = vmatprep.mubr.f32.mxu0 0.0
      %531 = vmatmul.mubr.f32.gmra.mxu0 %v426
      %v532 = vpop.f32.mrf.mxu0
      %v533 = vadd.f32 0.0, %v532
      %v534 = vpop.f32.mrf.mxu0
      %535 = vmatprep.mubr.f32.mxu0 0.0
      %536 = vmatmul.mubr.f32.gmra.mxu0 %v427
      %v537 = vpop.f32.mrf.mxu0
      %v538 = vadd.f32 0.0, %v537
      %v539 = vpop.f32.mrf.mxu0
      %540 = vmatprep.mubr.f32.mxu0 0.0
      %541 = vmatmul.mubr.f32.gmra.mxu0 %v428
      %v542 = vpop.f32.mrf.mxu0
      %v543 = vadd.f32 0.0, %v542
      %v544 = vpop.f32.mrf.mxu0
      %545 = vmatprep.mubr.f32.mxu0 0.0
      %546 = vmatmul.mubr.f32.gmra.mxu0 %v429
      %v547 = vpop.f32.mrf.mxu0
      %v548 = vadd.f32 0.0, %v547
      %v549 = vpop.f32.mrf.mxu0
      %550 = vmatprep.mubr.f32.mxu0 0.0
      %551 = vmatmul.mubr.f32.gmra.mxu0 %v430
      %v552 = vpop.f32.mrf.mxu0
      %v553 = vadd.f32 0.0, %v552
      %v554 = vpop.f32.mrf.mxu0
      %555 = vmatprep.mubr.f32.mxu0 0.0
      %556 = vmatmul.mubr.f32.gmra.mxu0 %v431
      %v557 = vpop.f32.mrf.mxu0
      %v558 = vadd.f32 0.0, %v557
      %v559 = vpop.f32.mrf.mxu0
      %560 = vmatprep.mubr.f32.mxu0 0.0
      %561 = vmatmul.mubr.f32.gmra.mxu0 %v432
      %v562 = vpop.f32.mrf.mxu0
      %v563 = vadd.f32 0.0, %v562
      %v564 = vpop.f32.mrf.mxu0
      %565 = vmatprep.mubr.f32.mxu0 0.0
      %566 = vmatmul.mubr.f32.gmra.mxu0 %v433
      %v567 = vpop.f32.mrf.mxu0
      %v568 = vadd.f32 0.0, %v567
      %v569 = vpop.f32.mrf.mxu0
      %570 = vmatprep.mubr.f32.mxu0 0.0
      %571 = vmatmul.mubr.f32.gmra.mxu0 %v434
      %v572 = vpop.f32.mrf.mxu0
      %v573 = vadd.f32 0.0, %v572
      %v574 = vpop.f32.mrf.mxu0
      %575 = vmatprep.mubr.f32.mxu0 0.0
      %576 = vmatmul.mubr.f32.gmra.mxu0 %v435
      %v577 = vpop.f32.mrf.mxu0
      %v578 = vadd.f32 0.0, %v577
      %v579 = vpop.f32.mrf.mxu0
      %580 = vdwg.mxu0
      %581 = vmatprep.subr.mxu0 0.0
      %582 = vmatpush1.msra.mxu0 %v419
      %583 = vmatprep.subr.mxu0 0.0
      %584 = vmatpush1.msra.mxu0 %v418
      %585 = vmatprep.subr.mxu0 0.0
      %586 = vmatpush1.msra.mxu0 %v417
      %587 = vmatprep.subr.mxu0 0.0
      %588 = vmatpush1.msra.mxu0 %v416
      %589 = vmatprep.subr.mxu0 0.0
      %590 = vmatpush1.msra.mxu0 %v415
      %591 = vmatprep.subr.mxu0 0.0
      %592 = vmatpush1.msra.mxu0 %v414
      %593 = vmatprep.subr.mxu0 0.0
      %594 = vmatpush1.msra.mxu0 %v413
      %595 = vmatprep.subr.mxu0 0.0
      %596 = vmatpush1.msra.mxu0 %v412
      %597 = vmatprep.subr.mxu0 0.0
      %598 = vmatpush1.msra.mxu0 %v411
      %599 = vmatprep.subr.mxu0 0.0
      %600 = vmatpush1.msra.mxu0 %v410
      %601 = vmatprep.subr.mxu0 0.0
      %602 = vmatpush1.msra.mxu0 %v409
      %603 = vmatprep.subr.mxu0 0.0
      %604 = vmatpush1.msra.mxu0 %v408
      %605 = vmatprep.subr.mxu0 0.0
      %606 = vmatpush1.msra.mxu0 %v407
      %607 = vmatprep.subr.mxu0 0.0
      %608 = vmatpush1.msra.mxu0 %v406
      %609 = vmatprep.subr.mxu0 0.0
      %610 = vmatpush1.msra.mxu0 %v405
      %611 = vmatprep.subr.mxu0 0.0
      %612 = vmatpush1.msra.mxu0 %v404
      %613 = vmatprep.subr.mxu0 0.0
      %614 = vmatpush2.msra.mxu0 0.0
      %615 = vmatprep.subr.mxu0 0.0
      %616 = vmatpush2.msra.mxu0 0.0
      %617 = vmatprep.subr.mxu0 0.0
      %618 = vmatpush2.msra.mxu0 0.0
      %619 = vmatprep.subr.mxu0 0.0
      %620 = vmatpush2.msra.mxu0 0.0
      %621 = vmatprep.subr.mxu0 0.0
      %622 = vmatpush2.msra.mxu0 0.0
      %623 = vmatprep.subr.mxu0 0.0
      %624 = vmatpush2.msra.mxu0 0.0
      %625 = vmatprep.subr.mxu0 0.0
      %626 = vmatpush2.msra.mxu0 0.0
      %627 = vmatprep.subr.mxu0 0.0
      %628 = vmatpush2.msra.mxu0 0.0
      %629 = vmatprep.subr.mxu0 0.0
      %630 = vmatpush2.msra.mxu0 0.0
      %631 = vmatprep.subr.mxu0 0.0
      %632 = vmatpush2.msra.mxu0 0.0
      %633 = vmatprep.subr.mxu0 0.0
      %634 = vmatpush2.msra.mxu0 0.0
      %635 = vmatprep.subr.mxu0 0.0
      %636 = vmatpush2.msra.mxu0 0.0
      %637 = vmatprep.subr.mxu0 0.0
      %638 = vmatpush2.msra.mxu0 0.0
      %639 = vmatprep.subr.mxu0 0.0
      %640 = vmatpush2.msra.mxu0 0.0
      %641 = vmatprep.subr.mxu0 0.0
      %642 = vmatpush2.msra.mxu0 0.0
      %643 = vmatprep.subr.mxu0 0.0
      %644 = vmatpush2.msra.mxu0 0.0
      %645 = vmatprep.mubr.f32.mxu0 0.0
      %646 = vmatmul.mubr.f32.gmra.mxu0 %v420
      %v647 = vpop.f32.mrf.mxu0
      %v648 = vadd.f32 0.0, %v647
      %v649 = vpop.f32.mrf.mxu0
      %650 = vmatprep.mubr.f32.mxu0 0.0
      %651 = vmatmul.mubr.f32.gmra.mxu0 %v421
      %v652 = vpop.f32.mrf.mxu0
      %v653 = vadd.f32 0.0, %v652
      %v654 = vpop.f32.mrf.mxu0
      %655 = vmatprep.mubr.f32.mxu0 0.0
      %656 = vmatmul.mubr.f32.gmra.mxu0 %v422
      %v657 = vpop.f32.mrf.mxu0
      %v658 = vadd.f32 0.0, %v657
      %v659 = vpop.f32.mrf.mxu0
      %660 = vmatprep.mubr.f32.mxu0 0.0
      %661 = vmatmul.mubr.f32.gmra.mxu0 %v423
      %v662 = vpop.f32.mrf.mxu0
      %v663 = vadd.f32 0.0, %v662
      %v664 = vpop.f32.mrf.mxu0
      %665 = vmatprep.mubr.f32.mxu0 0.0
      %666 = vmatmul.mubr.f32.gmra.mxu0 %v424
      %v667 = vpop.f32.mrf.mxu0
      %v668 = vadd.f32 0.0, %v667
      %v669 = vpop.f32.mrf.mxu0
      %670 = vmatprep.mubr.f32.mxu0 0.0
      %671 = vmatmul.mubr.f32.gmra.mxu0 %v425
      %v672 = vpop.f32.mrf.mxu0
      %v673 = vadd.f32 0.0, %v672
      %v674 = vpop.f32.mrf.mxu0
      %675 = vmatprep.mubr.f32.mxu0 0.0
      %676 = vmatmul.mubr.f32.gmra.mxu0 %v426
      %v677 = vpop.f32.mrf.mxu0
      %v678 = vadd.f32 0.0, %v677
      %v679 = vpop.f32.mrf.mxu0
      %680 = vmatprep.mubr.f32.mxu0 0.0
      %681 = vmatmul.mubr.f32.gmra.mxu0 %v427
      %v682 = vpop.f32.mrf.mxu0
      %v683 = vadd.f32 0.0, %v682
      %v684 = vpop.f32.mrf.mxu0
      %685 = vmatprep.mubr.f32.mxu0 0.0
      %686 = vmatmul.mubr.f32.gmra.mxu0 %v428
      %v687 = vpop.f32.mrf.mxu0
      %v688 = vadd.f32 0.0, %v687
      %v689 = vpop.f32.mrf.mxu0
      %690 = vmatprep.mubr.f32.mxu0 0.0
      %691 = vmatmul.mubr.f32.gmra.mxu0 %v429
      %v692 = vpop.f32.mrf.mxu0
      %v693 = vadd.f32 0.0, %v692
      %v694 = vpop.f32.mrf.mxu0
      %695 = vmatprep.mubr.f32.mxu0 0.0
      %696 = vmatmul.mubr.f32.gmra.mxu0 %v430
      %v697 = vpop.f32.mrf.mxu0
      %v698 = vadd.f32 0.0, %v697
      %v699 = vpop.f32.mrf.mxu0
      %700 = vmatprep.mubr.f32.mxu0 0.0
      %701 = vmatmul.mubr.f32.gmra.mxu0 %v431
      %v702 = vpop.f32.mrf.mxu0
      %v703 = vadd.f32 0.0, %v702
      %v704 = vpop.f32.mrf.mxu0
      %705 = vmatprep.mubr.f32.mxu0 0.0
      %706 = vmatmul.mubr.f32.gmra.mxu0 %v432
      %v707 = vpop.f32.mrf.mxu0
      %v708 = vadd.f32 0.0, %v707
      %v709 = vpop.f32.mrf.mxu0
      %710 = vmatprep.mubr.f32.mxu0 0.0
      %711 = vmatmul.mubr.f32.gmra.mxu0 %v433
      %v712 = vpop.f32.mrf.mxu0
      %v713 = vadd.f32 0.0, %v712
      %v714 = vpop.f32.mrf.mxu0
      %715 = vmatprep.mubr.f32.mxu0 0.0
      %716 = vmatmul.mubr.f32.gmra.mxu0 %v434
      %v717 = vpop.f32.mrf.mxu0
      %v718 = vadd.f32 0.0, %v717
      %v719 = vpop.f32.mrf.mxu0
      %720 = vmatprep.mubr.f32.mxu0 0.0
      %721 = vmatmul.mubr.f32.gmra.mxu0 %v435
      %v722 = vpop.f32.mrf.mxu0
      %v723 = vadd.f32 0.0, %v722
      %v724 = vpop.f32.mrf.mxu0
      %725 = vdwg.mxu0
      %v726 = vld [vmem:[%s2] sm:$0x1]
      %v727 = vmul.f32 %v503, %v648
      %v728 = vmul.f32 %v508, %v653
      %v729 = vmul.f32 %v513, %v658
      %v730 = vmul.f32 %v518, %v663
      %v731 = vmul.f32 %v523, %v668
      %v732 = vmul.f32 %v528, %v673
      %v733 = vmul.f32 %v533, %v678
      %v734 = vmul.f32 %v538, %v683
      %v735 = vmul.f32 %v543, %v688
      %v736 = vmul.f32 %v548, %v693
      %v737 = vmul.f32 %v553, %v698
      %v738 = vmul.f32 %v558, %v703
      %v739 = vmul.f32 %v563, %v708
      %v740 = vmul.f32 %v568, %v713
      %v741 = vmul.f32 %v573, %v718
      %v742 = vmul.f32 %v578, %v723
      %743 = vmatprep.subr.mxu0 0.0
      %744 = vmatpush1.msra.mxu0 %v742
      %745 = vmatprep.subr.mxu0 0.0
      %746 = vmatpush1.msra.mxu0 %v741
      %747 = vmatprep.subr.mxu0 0.0
      %748 = vmatpush1.msra.mxu0 %v740
      %749 = vmatprep.subr.mxu0 0.0
      %750 = vmatpush1.msra.mxu0 %v739
      %751 = vmatprep.subr.mxu0 0.0
      %752 = vmatpush1.msra.mxu0 %v738
      %753 = vmatprep.subr.mxu0 0.0
      %754 = vmatpush1.msra.mxu0 %v737
      %755 = vmatprep.subr.mxu0 0.0
      %756 = vmatpush1.msra.mxu0 %v736
      %757 = vmatprep.subr.mxu0 0.0
      %758 = vmatpush1.msra.mxu0 %v735
      %759 = vmatprep.subr.mxu0 0.0
      %760 = vmatpush1.msra.mxu0 %v734
      %761 = vmatprep.subr.mxu0 0.0
      %762 = vmatpush1.msra.mxu0 %v733
      %763 = vmatprep.subr.mxu0 0.0
      %764 = vmatpush1.msra.mxu0 %v732
      %765 = vmatprep.subr.mxu0 0.0
      %766 = vmatpush1.msra.mxu0 %v731
      %767 = vmatprep.subr.mxu0 0.0
      %768 = vmatpush1.msra.mxu0 %v730
      %769 = vmatprep.subr.mxu0 0.0
      %770 = vmatpush1.msra.mxu0 %v729
      %771 = vmatprep.subr.mxu0 0.0
      %772 = vmatpush1.msra.mxu0 %v728
      %773 = vmatprep.subr.mxu0 0.0
      %774 = vmatpush1.msra.mxu0 %v727
      %775 = vmatprep.subr.mxu0 0.0
      %776 = vmatpush2.msra.mxu0 0.0
      %777 = vmatprep.subr.mxu0 0.0
      %778 = vmatpush2.msra.mxu0 0.0
      %779 = vmatprep.subr.mxu0 0.0
      %780 = vmatpush2.msra.mxu0 0.0
      %781 = vmatprep.subr.mxu0 0.0
      %782 = vmatpush2.msra.mxu0 0.0
      %783 = vmatprep.subr.mxu0 0.0
      %784 = vmatpush2.msra.mxu0 0.0
      %785 = vmatprep.subr.mxu0 0.0
      %786 = vmatpush2.msra.mxu0 0.0
      %787 = vmatprep.subr.mxu0 0.0
      %788 = vmatpush2.msra.mxu0 0.0
      %789 = vmatprep.subr.mxu0 0.0
      %790 = vmatpush2.msra.mxu0 0.0
      %791 = vmatprep.subr.mxu0 0.0
      %792 = vmatpush2.msra.mxu0 0.0
      %793 = vmatprep.subr.mxu0 0.0
      %794 = vmatpush2.msra.mxu0 0.0
      %795 = vmatprep.subr.mxu0 0.0
      %796 = vmatpush2.msra.mxu0 0.0
      %797 = vmatprep.subr.mxu0 0.0
      %798 = vmatpush2.msra.mxu0 0.0
      %799 = vmatprep.subr.mxu0 0.0
      %800 = vmatpush2.msra.mxu0 0.0
      %801 = vmatprep.subr.mxu0 0.0
      %802 = vmatpush2.msra.mxu0 0.0
      %803 = vmatprep.subr.mxu0 0.0
      %804 = vmatpush2.msra.mxu0 0.0
      %805 = vmatprep.subr.mxu0 0.0
      %806 = vmatpush2.msra.mxu0 0.0
      %807 = vmatprep.mubr.f32.mxu0 0.0
      %808 = vmatmul.mubr.f32.gmra.mxu0 %v726
      %v809 = vpop.f32.mrf.mxu0
      %v810 = vadd.f32 0.0, %v809
      %v811 = vpop.f32.mrf.mxu0
      %812 = vdwg.mxu0
      %v813 = vxor.u32 %v810, 2147483648
      %v814 = vmul.f32 %v813, 1.442695
      %v815 = vpow.pop %v814
      %v816 = vadd.f32 %v815, 1.0
      %v817 = vrcp.pop %v816
      %v818 = vmul.f32 1.0, %v817
      %819 = vst [vmem:[#allocation8] sm:$0x1] %v818
    $region37: #{tpu_custom_call.1} parent=1 // pred_fallthru
      _
    // Predicated region
    $region38: #{tpu_custom_call.1} parent=1 // pred_check
      _
    $region39: #{tpu_custom_call.1} parent=1 // pred_check_branch
      %821 = sbr.rel (0) target = $region41
    $region40: #{tpu_custom_call.1} parent=1 // pred_region
      %s823 = ssub.s32 16, 16
      %824 = vsyncadd [#allocation5], %s823
      %s826 = sshll.u32 [#allocation8], 4
      %s827 = int_to_ptr.vmem [resolvable:$true] %s826
      %829 = dma.vmem_to_hbm [thread:$0]  %s827, 16, %s5, [#allocation5]
    $region41: #{tpu_custom_call.1} parent=1 // pred_fallthru
      _
    // Predicated region
    $region42: #{tpu_custom_call.1} parent=1 // pred_check
      _
    $region43: #{tpu_custom_call.1} parent=1 // pred_check_branch
      %831 = sbr.rel (0) target = $region45
    $region44: #{tpu_custom_call.1} parent=1 // pred_region
      %832 = dma.done [#allocation5], 16
    $region45: #{tpu_custom_call.1} parent=1 // pred_fallthru
      _
    %833 = vsyncpa [#allocation4], 1
    %834 = vsyncpa [#allocation7], 1
    %835 = vsyncpa [#allocation5], 1

</llo_original>
